<compile_context>
chip_gen: v7x
topology: tpu7x:2x2x1
jax: 0.10.0
libtpu: 0.0.40
codegen_flags: <defaults>
</compile_context>

<pallas_src>
import functools

import jax
import jax.numpy as jnp
from jax import lax
from jax.experimental import pallas as pl
from jax.experimental.pallas import tpu as pltpu


def attention_kernel(x_ref, w1_ref, b1_ref, w2_ref, b2_ref, out_ref,
                     *, s_valid, tanh_dtype):
    # x_ref:  (TB, S_pad, H)  batch tile, streaming dtype (bf16 by default)
    # w1_ref: (H, H) streaming dtype, b1_ref: (1, H) f32   -- first Linear (in, out)
    # w2_ref: (1, H) f32                                   -- second Linear as a row
    # b2_ref: (1, 1) f32 in SMEM                           -- second Linear bias
    # out_ref: (TB, H) f32
    TB, S_pad, H = x_ref.shape
    x = x_ref[...]                                               # (TB, S_pad, H)

    # ---- First Linear + Tanh: one big MXU matmul over all TB*S_pad rows. ----
    # S_pad is a multiple of the sublane tile, so this reshape is a free re-view.
    x2d = x.reshape(TB * S_pad, H)
    pre = (jnp.dot(x2d, w1_ref[...], preferred_element_type=jnp.float32)
           + b1_ref[...])                                        # (TB*S_pad, H) f32
    # bf16 tanh on v6e/v7x (bf16-capable single-slot EUP), f32 on v5e.
    h = jnp.tanh(pre.astype(tanh_dtype)).astype(jnp.float32)

    # ---- Second Linear (output width 1): VPU multiply + XLU lane-reduce. ----
    # Result is lane-dense (TB, S_pad) for the softmax, not (TB, S_pad, 1).
    h3 = h.reshape(TB, S_pad, H)
    scores = jnp.sum(h3 * w2_ref[...], axis=-1) + b2_ref[0, 0]   # (TB, S_pad)

    # Mask padded sequence positions so they get exactly zero softmax weight.
    if s_valid != S_pad:
        pos = lax.broadcasted_iota(jnp.int32, (TB, S_pad), 1)
        scores = jnp.where(pos < s_valid, scores, jnp.float32(-1e30))

    # ---- Softmax over the sequence axis (lane axis here), numerically stable. ----
    m = jnp.max(scores, axis=-1, keepdims=True)                  # (TB, 1)
    e = jnp.exp(scores - m)                                      # (TB, S_pad)
    denom = jnp.sum(e, axis=-1, keepdims=True)                   # (TB, 1)
    wts = e * pl.reciprocal(denom, approx=True)                  # (TB, S_pad)

    # ---- context = sum_s weights[s] * x[s]  (f32 accumulation). ----
    ctx = jnp.sum(wts[:, :, None] * x.astype(jnp.float32), axis=1)   # (TB, H)
    out_ref[...] = ctx.astype(out_ref.dtype)


def _device_vmem_plan():
    """Generation-aware VMEM limit + chip flags."""
    kind = jax.devices()[0].device_kind.lower()
    try:
        cap = int(pltpu.get_tpu_info().vmem_capacity_bytes)
    except Exception:
        cap = (64 << 20) if "v7" in kind else (128 << 20)
    if cap <= (64 << 20):           # v7x-class: 64 MiB per-TC VMEM
        vmem_limit = min(48 << 20, int(cap * 0.75))
    else:                           # v5e / v6e: 128 MiB physical VMEM
        vmem_limit = min(96 << 20, int(cap * 0.75))
    is_v5e = ("v5e" in kind) or ("v5 lite" in kind) or ("v5lite" in kind)
    two_core = "v7" in kind
    return vmem_limit, is_v5e, two_core


def _choose_batch_tile(B, s_pad, H, tile_budget_bytes, x_itemsize, two_core):
    """Largest batch tile whose working set fits the per-step VMEM budget.

    Working set per batch row ~ double-buffered x tile + ~3 f32 intermediates.
    TB is kept a multiple of 8 whenever num_blocks > 1 (out BlockSpec rule),
    and capped to give >= 2 blocks on 2-TensorCore chips (v7x).
    """
    per_row = s_pad * H * (2 * x_itemsize + 12)
    tb = max(1, int(tile_budget_bytes) // per_row)
    if two_core and B >= 16:
        half = (B + 1) // 2
        tb = min(tb, max(8, ((half + 7) // 8) * 8))
    if tb >= B:
        return B
    if tb < 8:
        # Never 1..7 with num_blocks > 1 (would break the (8,128) block rule);
        # for extreme S*H this leans on the raised vmem_limit.
        return min(8, B)
    return (tb // 8) * 8


def attention_layer(x, w1, b1, w2_row, b2, *, stream_dtype=jnp.bfloat16):
    """x: (B, S, H) f32, w1: (H, H), b1: (1, H), w2_row: (1, H), b2: (1, 1) -> (B, H)."""
    B, S, H = x.shape
    out_dtype = x.dtype

    vmem_limit, is_v5e, two_core = _device_vmem_plan()
    tanh_dtype = jnp.float32 if is_v5e else jnp.bfloat16  # v5e EUP has no bf16

    # Stream x / w1 at reduced precision; keep small params in f32.
    xs = x.astype(stream_dtype)
    w1s = w1.astype(stream_dtype)
    b1f = b1.astype(jnp.float32)
    w2f = w2_row.astype(jnp.float32)
    b2f = b2.astype(jnp.float32)

    itemsize = jnp.dtype(stream_dtype).itemsize
    sublane = 16 if itemsize == 2 else 8
    s_pad = ((S + sublane - 1) // sublane) * sublane
    if s_pad != S:
        # Pad the sequence axis so the in-kernel reshape is layout-free; padded
        # positions are masked inside the kernel.
        xs = jnp.pad(xs, ((0, 0), (0, s_pad - S), (0, 0)))

    # Batch tile from the VMEM plan (reserve room for the double-buffered w1).
    w1_vmem = 2 * H * H * itemsize
    tile_budget = max(int(vmem_limit * 0.6) - w1_vmem, 1 << 20)
    TB = _choose_batch_tile(B, s_pad, H, tile_budget, itemsize, two_core)
    num_blocks = (B + TB - 1) // TB   # partial edge block handled by Pallas

    kernel = functools.partial(attention_kernel, s_valid=S, tanh_dtype=tanh_dtype)

    out = pl.pallas_call(
        kernel,
        out_shape=jax.ShapeDtypeStruct((B, H), out_dtype),
        grid_spec=pltpu.PrefetchScalarGridSpec(
            num_scalar_prefetch=0,
            grid=(num_blocks,),
            in_specs=[
                pl.BlockSpec((TB, s_pad, H), lambda b: (b, 0, 0)),   # x batch tile
                pl.BlockSpec((H, H), lambda b: (0, 0)),              # w1 (grid-invariant)
                pl.BlockSpec((1, H), lambda b: (0, 0)),              # b1
                pl.BlockSpec((1, H), lambda b: (0, 0)),              # w2 as a row
                pl.BlockSpec(memory_space=pltpu.MemorySpace.SMEM),   # b2 scalar
            ],
            out_specs=pl.BlockSpec((TB, H), lambda b: (b, 0)),
        ),
        compiler_params=pltpu.CompilerParams(
            dimension_semantics=("parallel",),     # batch tiles split across TCs
            vmem_limit_bytes=vmem_limit,
        ),
    )(xs, w1s, b1f, w2f, b2f)
    return out


def reference(x, w1, b1, w2_row, b2):
    # Pure-JAX reference mirroring the PyTorch forward (f32 throughout).
    h = jnp.tanh(x @ w1 + b1[None, :, :])                  # (B, S, H)
    scores = h @ w2_row.T + b2[None, :, :]                 # (B, S, 1)
    weights = jax.nn.softmax(scores, axis=1)
    return jnp.sum(weights * x, axis=1)                    # (B, H)


if __name__ == "__main__":
    B, S, H = 2, 8, 32
    key = jax.random.PRNGKey(0)
    kx, kw1, kb1, kw2, kb2 = jax.random.split(key, 5)

    x = jax.random.normal(kx, (B, S, H), dtype=jnp.float32)

    # Deterministic parameter init (Linear weights stored as (in, out);
    # the second Linear's weight is kept as a (1, H) row for the VPU path).
    scale = 1.0 / jnp.sqrt(H)
    w1 = jax.random.uniform(kw1, (H, H), jnp.float32, -scale, scale)
    b1 = jax.random.uniform(kb1, (1, H), jnp.float32, -scale, scale)
    w2 = jax.random.uniform(kw2, (1, H), jnp.float32, -scale, scale)
    b2 = jax.random.uniform(kb2, (1, 1), jnp.float32, -scale, scale)

    out = jax.block_until_ready(attention_layer(x, w1, b1, w2, b2))
    assert out.shape == (B, H)

    # Quantization-aware reference (same bf16 cast of x/w1 the kernel streams):
    xq = x.astype(jnp.bfloat16).astype(jnp.float32)
    w1q = w1.astype(jnp.bfloat16).astype(jnp.float32)
    ref_q = reference(xq, w1q, b1, w2, b2)
    assert jnp.allclose(out, ref_q, atol=1e-2, rtol=1e-2), "mismatch vs bf16-cast reference"

    # Full-precision reference; tolerance accounts for intentional bf16
    # streaming, bf16 tanh (v6e/v7x) and the approx (EUP) reciprocal.
    ref_full = reference(x, w1, b1, w2, b2)
    assert jnp.allclose(out, ref_full, atol=3e-2, rtol=3e-2), "mismatch vs f32 reference"

    print("KERNEL_OK")
</pallas_src>

<mosaic_0001>
module attributes {stable_mosaic.version = 11 : i64} {
  func.func @attention_kernel(%arg0: i32, %arg1: memref<2x16x32xbf16, #tpu.memory_space<vmem>>, %arg2: memref<32x32xbf16, #tpu.memory_space<vmem>>, %arg3: memref<1x32xf32, #tpu.memory_space<vmem>>, %arg4: memref<1x32xf32, #tpu.memory_space<vmem>>, %arg5: memref<1x1xf32, #tpu.memory_space<smem>>, %arg6: memref<2x32xf32, #tpu.memory_space<vmem>>) attributes {dimension_semantics = [#tpu.dimension_semantics<parallel>], iteration_bounds = array<i64: 1>, scalar_prefetch = 0 : i64, scratch_operands = 0 : i64, tpu.core_type = #tpu.core_type<tc>, window_params = [{transform_indices = @transform_0, window_bounds = array<i64: 2, 16, 32>}, {pipeline_mode = #tpu.pipeline_mode<synchronous>, transform_indices = @transform_1, window_bounds = array<i64: 32, 32>}, {pipeline_mode = #tpu.pipeline_mode<synchronous>, transform_indices = @transform_2, window_bounds = array<i64: 1, 32>}, {pipeline_mode = #tpu.pipeline_mode<synchronous>, transform_indices = @transform_3, window_bounds = array<i64: 1, 32>}, {transform_indices = @transform_4, window_bounds = array<i64: 1, 1>}, {transform_indices = @transform_5, window_bounds = array<i64: 2, 32>}]} {
    %c0 = arith.constant 0 : index
    %c0_0 = arith.constant 0 : index
    %c0_1 = arith.constant 0 : index
    %0 = vector.load %arg1[%c0, %c0_0, %c0_1] : memref<2x16x32xbf16, #tpu.memory_space<vmem>>, vector<2x16x32xbf16>
    %1 = vector.shape_cast %0 : vector<2x16x32xbf16> to vector<32x32xbf16>
    %c0_2 = arith.constant 0 : index
    %c0_3 = arith.constant 0 : index
    %2 = vector.load %arg2[%c0_2, %c0_3] : memref<32x32xbf16, #tpu.memory_space<vmem>>, vector<32x32xbf16>
    %cst = arith.constant dense<0.000000e+00> : vector<32x32xf32>
    %3 = tpu.matmul %1, %2, %cst {dimension_numbers = #tpu.dot_dimension_numbers<[1], [0], [0], [1], [0, 0, 1, 1], [], []>} : vector<32x32xbf16>, vector<32x32xbf16>, vector<32x32xf32> -> vector<32x32xf32>
    %c0_4 = arith.constant 0 : index
    %c0_5 = arith.constant 0 : index
    %4 = vector.load %arg3[%c0_4, %c0_5] : memref<1x32xf32, #tpu.memory_space<vmem>>, vector<1x32xf32>
    %5 = vector.broadcast %4 : vector<1x32xf32> to vector<32x32xf32>
    %6 = arith.addf %3, %5 : vector<32x32xf32>
    %7 = arith.truncf %6 : vector<32x32xf32> to vector<32x32xbf16>
    %8 = math.tanh %7 : vector<32x32xbf16>
    %9 = arith.extf %8 : vector<32x32xbf16> to vector<32x32xf32>
    %10 = vector.shape_cast %9 : vector<32x32xf32> to vector<2x16x32xf32>
    %c0_6 = arith.constant 0 : index
    %c0_7 = arith.constant 0 : index
    %11 = vector.load %arg4[%c0_6, %c0_7] : memref<1x32xf32, #tpu.memory_space<vmem>>, vector<1x32xf32>
    %12 = vector.shape_cast %11 : vector<1x32xf32> to vector<1x1x32xf32>
    %13 = vector.broadcast %12 : vector<1x1x32xf32> to vector<2x16x32xf32>
    %14 = arith.mulf %10, %13 : vector<2x16x32xf32>
    %cst_8 = arith.constant dense<0.000000e+00> : vector<2x16xf32>
    %15 = vector.multi_reduction <add>, %14, %cst_8 [2] : vector<2x16x32xf32> to vector<2x16xf32>
    %c0_9 = arith.constant 0 : index
    %c0_10 = arith.constant 0 : index
    %16 = memref.load %arg5[%c0_9, %c0_10] : memref<1x1xf32, #tpu.memory_space<smem>>
    %17 = vector.broadcast %16 : f32 to vector<2x16xf32>
    %18 = arith.addf %15, %17 : vector<2x16xf32>
    %19 = tpu.iota {dimensions = array<i32: 1>} : vector<2x16xi32>
    %c8_i32 = arith.constant 8 : i32
    %20 = vector.broadcast %c8_i32 : i32 to vector<2x16xi32>
    %21 = arith.cmpi slt, %19, %20 : vector<2x16xi32>
    %cst_11 = arith.constant -1.000000e+30 : f32
    %22 = vector.broadcast %cst_11 : f32 to vector<2x16xf32>
    %23 = arith.select %21, %18, %22 : vector<2x16xi1>, vector<2x16xf32>
    %cst_12 = arith.constant dense<0xFF800000> : vector<2xf32>
    %24 = vector.multi_reduction <maximumf>, %23, %cst_12 [1] : vector<2x16xf32> to vector<2xf32>
    %25 = vector.shape_cast %24 : vector<2xf32> to vector<2x1xf32>
    %26 = vector.broadcast %25 : vector<2x1xf32> to vector<2x16xf32>
    %27 = arith.subf %23, %26 : vector<2x16xf32>
    %28 = math.exp %27 : vector<2x16xf32>
    %cst_13 = arith.constant dense<0.000000e+00> : vector<2xf32>
    %29 = vector.multi_reduction <add>, %28, %cst_13 [1] : vector<2x16xf32> to vector<2xf32>
    %30 = vector.shape_cast %29 : vector<2xf32> to vector<2x1xf32>
    %31 = tpu.reciprocal %30 {approx = true} : vector<2x1xf32> -> vector<2x1xf32>
    %32 = vector.broadcast %31 : vector<2x1xf32> to vector<2x16xf32>
    %33 = arith.mulf %28, %32 : vector<2x16xf32>
    %34 = vector.shape_cast %33 : vector<2x16xf32> to vector<2x16x1xf32>
    %35 = arith.extf %0 : vector<2x16x32xbf16> to vector<2x16x32xf32>
    %36 = vector.broadcast %34 : vector<2x16x1xf32> to vector<2x16x32xf32>
    %37 = arith.mulf %36, %35 : vector<2x16x32xf32>
    %cst_14 = arith.constant dense<0.000000e+00> : vector<2x32xf32>
    %38 = vector.multi_reduction <add>, %37, %cst_14 [1] : vector<2x16x32xf32> to vector<2x32xf32>
    %c0_15 = arith.constant 0 : index
    %c0_16 = arith.constant 0 : index
    %39 = vector.load %arg6[%c0_15, %c0_16] : memref<2x32xf32, #tpu.memory_space<vmem>>, vector<2x32xf32>
    tpu.vector_store %arg6[%c0_15, %c0_16], %38 {strides = array<i32>} : memref<2x32xf32, #tpu.memory_space<vmem>>, vector<2x32xf32>,
    return
  }
  func.func @transform_0(%arg0: i32) -> (i32, i32, i32) {
    %c0_i32 = arith.constant 0 : i32
    %c0_i32_0 = arith.constant 0 : i32
    %c0_i32_1 = arith.constant 0 : i32
    return %arg0, %c0_i32, %c0_i32_0 : i32, i32, i32
  }
  func.func @transform_1(%arg0: i32) -> (i32, i32) {
    %c0_i32 = arith.constant 0 : i32
    %c0_i32_0 = arith.constant 0 : i32
    %c0_i32_1 = arith.constant 0 : i32
    return %c0_i32, %c0_i32_0 : i32, i32
  }
  func.func @transform_2(%arg0: i32) -> (i32, i32) {
    %c0_i32 = arith.constant 0 : i32
    %c0_i32_0 = arith.constant 0 : i32
    %c0_i32_1 = arith.constant 0 : i32
    return %c0_i32, %c0_i32_0 : i32, i32
  }
  func.func @transform_3(%arg0: i32) -> (i32, i32) {
    %c0_i32 = arith.constant 0 : i32
    %c0_i32_0 = arith.constant 0 : i32
    %c0_i32_1 = arith.constant 0 : i32
    return %c0_i32, %c0_i32_0 : i32, i32
  }
  func.func @transform_4(%arg0: i32) -> (i32, i32) {
    %c0_i32 = arith.constant 0 : i32
    %c0_i32_0 = arith.constant 0 : i32
    %c0_i32_1 = arith.constant 0 : i32
    return %c0_i32, %c0_i32_0 : i32, i32
  }
  func.func @transform_5(%arg0: i32) -> (i32, i32) {
    %c0_i32 = arith.constant 0 : i32
    %c0_i32_0 = arith.constant 0 : i32
    return %arg0, %c0_i32 : i32, i32
  }
}

</mosaic_0001>

<llo_original>
// kernel: tpu_custom_call.1
$region0: #{tpu_custom_call.1}
  #allocation0 [shape = 'u32[]', space=smem, size = 0x4, offset = 0x4, fixed_abs, tag = 'smem constant byte address 0x4 - core index']
  #allocation1 [shape = 'u32[144,128]{1,0:T(1,128)}', space=vmem, size = 0x12000, scoped, tag = 'internal scratch']
  #allocation2 [shape = 'f32[1,1]{1,0:T(1,128)S(6)}', space=smem, size = 0x200, scoped, tag = 'scoped memory for tpu_custom_call.1']
  %s0 = inlined_call_operand.hbm [shape: bf16[2,16,32], index: 0, kind: input, shape index: {}]
  %s1 = inlined_call_operand.hbm [shape: bf16[32,32], index: 1, kind: input, shape index: {}]
  %s2 = inlined_call_operand.hbm [shape: f32[1,32], index: 2, kind: input, shape index: {}]
  %s3 = inlined_call_operand.hbm [shape: f32[1,32], index: 3, kind: input, shape index: {}]
  %s4 = inlined_call_operand.<no memory space> [shape: f32[1,1], index: 4, kind: input, shape index: {}]
  %s5 = inlined_call_operand.hbm [shape: f32[2,32], index: 5, kind: output, shape index: {}]
  %s6 = sld [smem:[#allocation0]]
  $region46: #{tpu_custom_call.1} parent=0
    _
  %s8 = ssub.s32 1, %s6
  %s9 = scalar_select 0, %s8, %s6
  %10 = sst [smem:[#allocation2]] %s4
  $region1: #{tpu_custom_call.1} parent=0
    #allocation3 [shape = 'u8[8192]{0}', space=vmem, size = 0x2000, scoped, tag = 'input window, operand 0, single buffered']
    #allocation4 [shape = 's32[1]{0}', space=sflag, size = 0x4, scoped, tag = 'scoped memory for tpu_custom_call.1']
    #allocation5 [shape = 's32[1]{0}', space=sflag, size = 0x4, scoped, tag = 'scoped memory for tpu_custom_call.1']
    #allocation6 [shape = 'u8[8192]{0}', space=vmem, size = 0x2000, scoped, tag = 'input window, operand 1, single buffered']
    #allocation7 [shape = 's32[1]{0}', space=sflag, size = 0x4, scoped, tag = 'scoped memory for tpu_custom_call.1']
    #allocation8 [shape = 'u8[512]{0}', space=vmem, size = 0x400, scoped, tag = 'input window, operand 2, single buffered']
    #allocation9 [shape = 'u8[512]{0}', space=vmem, size = 0x400, scoped, tag = 'input window, operand 3, single buffered']
    #allocation10 [shape = 's32[1]{0}', space=sflag, size = 0x4, scoped, tag = 'scoped memory for tpu_custom_call.1']
    #allocation11 [shape = 'u8[1024]{0}', space=vmem, size = 0x400, scoped, tag = 'output window, operand 0, single buffered']
    %11 = vsyncpa [#allocation4], 0
    %12 = vsyncpa [#allocation7], 0
    %13 = vsyncpa [#allocation10], 0
    %14 = vsyncpa [#allocation5], 0
    // Predicated region
    $region2: #{tpu_custom_call.1} parent=1 // pred_check
      _
    $region3: #{tpu_custom_call.1} parent=1 // pred_check_branch
      %16 = sbr.rel (0) target = $region5
    $region4: #{tpu_custom_call.1} parent=1 // pred_region
      %s18 = ssub.s32 256, 256
      %19 = vsyncadd [#allocation4], %s18
      %s20 = sshll.u32 [#allocation3], 4
      %s21 = int_to_ptr.vmem [resolvable:$true] %s20
      %26 = dma.hbm_to_vmem [thread:$0]  %s0, 256, %s21, [#allocation4], 64, 64, 4
    $region5: #{tpu_custom_call.1} parent=1 // pred_fallthru
      _
    // Predicated region
    $region6: #{tpu_custom_call.1} parent=1 // pred_check
      _
    $region7: #{tpu_custom_call.1} parent=1 // pred_check_branch
      %28 = sbr.rel (0) target = $region9
    $region8: #{tpu_custom_call.1} parent=1 // pred_region
      %s30 = ssub.s32 256, 256
      %31 = vsyncadd [#allocation7], %s30
      %s32 = sshll.u32 [#allocation6], 4
      %s33 = int_to_ptr.vmem [resolvable:$true] %s32
      %38 = dma.hbm_to_vmem [thread:$0]  %s1, 256, %s33, [#allocation7], 64, 64, 4
    $region9: #{tpu_custom_call.1} parent=1 // pred_fallthru
      _
    // Predicated region
    $region10: #{tpu_custom_call.1} parent=1 // pred_check
      _
    $region11: #{tpu_custom_call.1} parent=1 // pred_check_branch
      %40 = sbr.rel (0) target = $region13
    $region12: #{tpu_custom_call.1} parent=1 // pred_region
      %s42 = ssub.s32 16, 16
      %43 = vsyncadd [#allocation7], %s42
      %s45 = sshll.u32 [#allocation8], 4
      %s46 = int_to_ptr.vmem [resolvable:$true] %s45
      %48 = dma.hbm_to_vmem [thread:$0]  %s2, 16, %s46, [#allocation7]
    $region13: #{tpu_custom_call.1} parent=1 // pred_fallthru
      _
    // Predicated region
    $region14: #{tpu_custom_call.1} parent=1 // pred_check
      _
    $region15: #{tpu_custom_call.1} parent=1 // pred_check_branch
      %50 = sbr.rel (0) target = $region17
    $region16: #{tpu_custom_call.1} parent=1 // pred_region
      %s52 = ssub.s32 16, 16
      %53 = vsyncadd [#allocation10], %s52
      %s55 = sshll.u32 [#allocation9], 4
      %s56 = int_to_ptr.vmem [resolvable:$true] %s55
      %58 = dma.hbm_to_vmem [thread:$0]  %s3, 16, %s56, [#allocation10]
    $region17: #{tpu_custom_call.1} parent=1 // pred_fallthru
      _
    // Predicated region
    $region18: #{tpu_custom_call.1} parent=1 // pred_check
      _
    $region19: #{tpu_custom_call.1} parent=1 // pred_check_branch
      %60 = sbr.rel (0) target = $region21
    $region20: #{tpu_custom_call.1} parent=1 // pred_region
      _
    $region21: #{tpu_custom_call.1} parent=1 // pred_fallthru
      _
    // Predicated region
    $region22: #{tpu_custom_call.1} parent=1 // pred_check
      _
    $region23: #{tpu_custom_call.1} parent=1 // pred_check_branch
      %62 = sbr.rel (0) target = $region25
    $region24: #{tpu_custom_call.1} parent=1 // pred_region
      %63 = dma.done [#allocation4], 256
    $region25: #{tpu_custom_call.1} parent=1 // pred_fallthru
      _
    // Predicated region
    $region26: #{tpu_custom_call.1} parent=1 // pred_check
      _
    $region27: #{tpu_custom_call.1} parent=1 // pred_check_branch
      %65 = sbr.rel (0) target = $region29
    $region28: #{tpu_custom_call.1} parent=1 // pred_region
      %66 = dma.done [#allocation7], 256
    $region29: #{tpu_custom_call.1} parent=1 // pred_fallthru
      _
    // Predicated region
    $region30: #{tpu_custom_call.1} parent=1 // pred_check
      _
    $region31: #{tpu_custom_call.1} parent=1 // pred_check_branch
      %68 = sbr.rel (0) target = $region33
    $region32: #{tpu_custom_call.1} parent=1 // pred_region
      %69 = dma.done [#allocation7], 16
    $region33: #{tpu_custom_call.1} parent=1 // pred_fallthru
      _
    // Predicated region
    $region34: #{tpu_custom_call.1} parent=1 // pred_check
      _
    $region35: #{tpu_custom_call.1} parent=1 // pred_check_branch
      %71 = sbr.rel (0) target = $region37
    $region36: #{tpu_custom_call.1} parent=1 // pred_region
      %72 = dma.done [#allocation10], 16
    $region37: #{tpu_custom_call.1} parent=1 // pred_fallthru
      _
    %v74 = vld [vmem:[#allocation3] sm:$0xf]
    %v75 = vld [vmem:[#allocation3 + $0x4] sm:$0xf]
    %v76 = vld [vmem:[#allocation3 + $0x8] sm:$0xf]
    %v77 = vld [vmem:[#allocation3 + $0xc] sm:$0xf]
    %v78 = vld [vmem:[#allocation6] sm:$0xf]
    %v79 = vld [vmem:[#allocation6 + $0x4] sm:$0xf]
    %v80 = vld [vmem:[#allocation6 + $0x8] sm:$0xf]
    %v81 = vld [vmem:[#allocation6 + $0xc] sm:$0xf]
    %v82 = vld [vmem:[#allocation8] sm:$0x1]
    %v84 = vlaneseq
    %v85 = vshrl.u32 %v84, 7
    %v86 = vsub.s32 0, %v85
    %v87 = vrot.slane %v82, %v86
    %v93 = vunpack.c.l.b16 %v74
    %v94 = vunpack.c.l.b16 %v75
    %v95 = vunpack.c.l.b16 %v76
    %v96 = vunpack.c.l.b16 %v77
    %v97 = vpack.c.b16 %v94, %v93
    %v98 = vpack.c.b16 %v96, %v95
    %v103 = vunpack.c.l.b16 %v78
    %v104 = vunpack.c.l.b16 %v79
    %v105 = vunpack.c.l.b16 %v80
    %v106 = vunpack.c.l.b16 %v81
    %v107 = vpack.c.b16 %v104, %v103
    %v108 = vpack.c.b16 %v106, %v105
    %vm111 = vcmask 261120
    %v113 = vsel %vm111, %v97, 0
    %v116 = vsel %vm111, %v98, 0
    %118 = vmatprep.subr.bf16.mxu0 0
    %119 = vmatpush1.bf16.msra.mxu0 %v107
    %120 = vmatprep.subr.bf16.mxu0 0
    %121 = vmatpush1.bf16.msra.mxu0 %v108
    %122 = vmatprep.subr.bf16.mxu0 0
    %123 = vmatpush1.bf16.msra.mxu0 0
    %124 = vmatprep.subr.bf16.mxu0 0
    %125 = vmatpush1.bf16.msra.mxu0 0
    %126 = vmatprep.subr.bf16.mxu0 0
    %127 = vmatpush1.bf16.msra.mxu0 0
    %128 = vmatprep.subr.bf16.mxu0 0
    %129 = vmatpush1.bf16.msra.mxu0 0
    %130 = vmatprep.subr.bf16.mxu0 0
    %131 = vmatpush1.bf16.msra.mxu0 0
    %132 = vmatprep.subr.bf16.mxu0 0
    %133 = vmatpush1.bf16.msra.mxu0 0
    %134 = vmatprep.subr.bf16.mxu0 0
    %135 = vmatpush1.bf16.msra.mxu0 0
    %136 = vmatprep.subr.bf16.mxu0 0
    %137 = vmatpush1.bf16.msra.mxu0 0
    %138 = vmatprep.subr.bf16.mxu0 0
    %139 = vmatpush1.bf16.msra.mxu0 0
    %140 = vmatprep.subr.bf16.mxu0 0
    %141 = vmatpush1.bf16.msra.mxu0 0
    %142 = vmatprep.subr.bf16.mxu0 0
    %143 = vmatpush1.bf16.msra.mxu0 0
    %144 = vmatprep.subr.bf16.mxu0 0
    %145 = vmatpush1.bf16.msra.mxu0 0
    %146 = vmatprep.subr.bf16.mxu0 0
    %147 = vmatpush1.bf16.msra.mxu0 0
    %148 = vmatprep.subr.bf16.mxu0 0
    %149 = vmatpush1.bf16.msra.mxu0 0
    %150 = vmatprep.mubr.bf16.mxu0 0
    %151 = vmatmul.mubr.bf16.gmra.mrb[0].mxu0 %v113
    %v152 = vpop.f32.mrb[0].mxu0
    %v153 = vadd.f32 %v87, %v152
    %v154 = vpop.f32.mrb[0].mxu0
    %v155 = vpop.f32.mrb[0].mxu0
    %v156 = vadd.f32 %v87, %v155
    %v157 = vpop.f32.mrb[0].mxu0
    %158 = vmatprep.mubr.bf16.mxu0 0
    %159 = vmatmul.mubr.bf16.gmra.mrb[0].mxu0 %v116
    %v160 = vpop.f32.mrb[0].mxu0
    %v161 = vadd.f32 %v87, %v160
    %v162 = vpop.f32.mrb[0].mxu0
    %v163 = vpop.f32.mrb[0].mxu0
    %v164 = vadd.f32 %v87, %v163
    %v165 = vpop.f32.mrb[0].mxu0
    %166 = vdwg.mxu0
    %v167 = vpack.c.bf16 %v156, %v153
    %v168 = vpack.c.bf16 %v164, %v161
    %v169 = vtanh.bf16.pop %v167
    %v170 = vtanh.bf16.pop %v168
    %v171 = vunpack.c.l.bf16 %v169
    %v172 = vunpack.c.h.bf16 %v169
    %v173 = vunpack.c.l.bf16 %v170
    %v174 = vunpack.c.h.bf16 %v170
    %v175 = vld [vmem:[#allocation9] sm:$0x1]
    %v177 = vlaneseq
    %v178 = vshrl.u32 %v177, 7
    %v179 = vsub.s32 0, %v178
    %v180 = vrot.slane %v175, %v179
    %v182 = vmul.f32 %v171, %v180
    %v183 = vmul.f32 %v172, %v180
    %v184 = vmul.f32 %v173, %v180
    %v185 = vmul.f32 %v174, %v180
    %v186 = vsel %vm111, %v182, 0.0
    %187 = vadd.xlane.f32.xlu0 %v186
    %v188 = vpop.xlane.xlu0 %187
    %v189 = vsel %vm111, %v183, 0.0
    %190 = vadd.xlane.f32.xlu0 %v189
    %v191 = vpop.xlane.xlu0 %190
    %v192 = vsel %vm111, %v184, 0.0
    %193 = vadd.xlane.f32.xlu0 %v192
    %v194 = vpop.xlane.xlu0 %193
    %v195 = vsel %vm111, %v185, 0.0
    %196 = vadd.xlane.f32.xlu0 %v195
    %v197 = vpop.xlane.xlu0 %196
    %s198 = sld [smem:[#allocation2]]
    %v199 = vstv %s198
    %v200 = vadd.f32 %v188, %v199
    %v201 = vadd.f32 %v191, %v199
    %v202 = vadd.f32 %v194, %v199
    %v203 = vadd.f32 %v197, %v199
    %v204 = vlaneseq
    %v205 = vand.u32 %v204, 127
    %vm206 = vcmp.lt.s32.totalorder %v205, 8
    %v211 = vlaneseq
    %v212 = vshrl.u32 %v211, 7
    %v213 = vsub.s32 %v205, %v212
    %v214 = vrot.slane %v200, %v213
    %v215 = vadd.s32 %v205, 4294967288
    %v216 = vlaneseq
    %v217 = vshrl.u32 %v216, 7
    %v218 = vsub.s32 %v215, %v217
    %v219 = vrot.slane %v201, %v218
    %vm220 = vcmask 130112
    %v221 = vsel %vm220, %v219, %v214
    %v222 = vlaneseq
    %v223 = vshrl.u32 %v222, 7
    %v224 = vsub.s32 %v205, %v223
    %v225 = vrot.slane %v202, %v224
    %v226 = vlaneseq
    %v227 = vshrl.u32 %v226, 7
    %v228 = vsub.s32 %v215, %v227
    %v229 = vrot.slane %v203, %v228
    %v230 = vsel %vm220, %v229, %v225
    %vm231 = vcmask 1041409
    %v232 = vsel %vm231, %v230, %v221
    %v234 = vsel %vm206, %v232, -1e+30
    %vm235 = vcmask 123904
    %v236 = vsel %vm235, %v234, -inf
    %237 = vmax.xlane.f32.xlu0 %v236
    %v238 = vpop.xlane.xlu0 %237
    %v239 = vsub.f32 %v234, %v238
    %v240 = vmul.f32 %v239, 1.442695
    %v241 = vpow.pop %v240
    %v242 = vsel %vm235, %v241, 0.0
    %243 = vadd.xlane.f32.xlu0 %v242
    %v244 = vpop.xlane.xlu0 %243
    %v245 = vrcp.pop %v244
    %v246 = vmul.f32 %v241, %v245
    %v247 = vlaneseq
    %v248 = vshrl.u32 %v247, 7
    %v249 = vsub.s32 0, %v248
    %v250 = vrot.slane %v246, %v249
    %252 = vbcast.lane.b32.xlu0 %v250, 256
    %v253 = vpop.permute.xlu0 %252
    %s255 = sor.u32 256, 8
    %256 = vbcast.lane.b32.xlu0 %v250, %s255
    %v257 = vpop.permute.xlu0 %256
    %v258 = vlaneseq
    %v259 = vshrl.u32 %v258, 7
    %v260 = vsub.s32 1, %v259
    %v261 = vrot.slane %v246, %v260
    %263 = vbcast.lane.b32.xlu0 %v261, 256
    %v264 = vpop.permute.xlu0 %263
    %s266 = sor.u32 256, 8
    %267 = vbcast.lane.b32.xlu0 %v261, %s266
    %v268 = vpop.permute.xlu0 %267
    %v269 = vunpack.c.l.bf16 %v74
    %v270 = vunpack.c.l.bf16 %v75
    %v271 = vunpack.c.l.bf16 %v76
    %v272 = vunpack.c.l.bf16 %v77
    %v273 = vmul.f32 %v253, %v269
    %v274 = vmul.f32 %v257, %v270
    %v275 = vmul.f32 %v264, %v271
    %v276 = vmul.f32 %v268, %v272
    %v277 = vsel %vm111, %v273, 0.0
    %v278 = vsel %vm111, %v274, 0.0
    %v279 = vadd.f32 %v277, %v278
    %v280 = vrot.slane %v279, 4
    %v281 = vadd.f32 %v279, %v280
    %v282 = vrot.slane %v281, 2
    %v283 = vadd.f32 %v281, %v282
    %v284 = vrot.slane %v283, 1
    %v285 = vadd.f32 %v283, %v284
    %v286 = vsel %vm111, %v275, 0.0
    %v287 = vsel %vm111, %v276, 0.0
    %v288 = vadd.f32 %v286, %v287
    %v289 = vrot.slane %v288, 4
    %v290 = vadd.f32 %v288, %v289
    %v291 = vrot.slane %v290, 2
    %v292 = vadd.f32 %v290, %v291
    %v293 = vrot.slane %v292, 1
    %v294 = vadd.f32 %v292, %v293
    %v297 = vsel %vm231, %v294, %v285
    %vm299 = vcmask 254976
    %300 = vst.msk [vmem:[#allocation11] sm:$0x3] %vm299, %v297
    // Predicated region
    $region38: #{tpu_custom_call.1} parent=1 // pred_check
      _
    $region39: #{tpu_custom_call.1} parent=1 // pred_check_branch
      %302 = sbr.rel (0) target = $region41
    $region40: #{tpu_custom_call.1} parent=1 // pred_region
      %s304 = ssub.s32 32, 32
      %305 = vsyncadd [#allocation5], %s304
      %s307 = sshll.u32 [#allocation11], 4
      %s308 = int_to_ptr.vmem [resolvable:$true] %s307
      %310 = dma.vmem_to_hbm [thread:$0]  %s308, 32, %s5, [#allocation5]
    $region41: #{tpu_custom_call.1} parent=1 // pred_fallthru
      _
    // Predicated region
    $region42: #{tpu_custom_call.1} parent=1 // pred_check
      _
    $region43: #{tpu_custom_call.1} parent=1 // pred_check_branch
      %312 = sbr.rel (0) target = $region45
    $region44: #{tpu_custom_call.1} parent=1 // pred_region
      %313 = dma.done [#allocation5], 32
    $region45: #{tpu_custom_call.1} parent=1 // pred_fallthru
      _
    %314 = vsyncpa [#allocation4], 1
    %315 = vsyncpa [#allocation7], 1
    %316 = vsyncpa [#allocation10], 1
    %317 = vsyncpa [#allocation5], 1

</llo_original>
